<compile_context>
chip_gen: v6e
topology: v6e:2x2x1
jax: 0.10.0
libtpu: 0.0.40
codegen_flags: <defaults>
</compile_context>

<pallas_src>
import functools

import jax
import jax.numpy as jnp
from jax.experimental import pallas as pl
from jax.experimental.pallas import tpu as pltpu


def _round_up(n, m):
    return ((n + m - 1) // m) * m


def _fused_head_kernel(x_ref, w_ref, b_ref, out_ref):
    # x: [TB, D], w: [D, OW], b: [1, OW]  ->  out: [TB, OW]
    out_ref[...] = (
        jnp.dot(x_ref[...], w_ref[...], preferred_element_type=jnp.float32)
        + b_ref[...]
    ).astype(out_ref.dtype)


def fuse_head_params(w_agender, b_agender, w_mask, b_mask, *, out_width=16):
    """One-time parameter fusion (call at load time, NOT per forward).

    Takes PyTorch-layout weights (W [out, in], b [out]) and returns the fused,
    lane-padded [D, OW] weight and [1, OW] bias used by the kernel.
    """
    Oa, D = w_agender.shape
    Om = w_mask.shape[0]
    O = Oa + Om
    OW = max(out_width, O)
    w_cat = jnp.concatenate([w_agender.T, w_mask.T], axis=1)      # [D, O]
    w_cat = jnp.pad(w_cat, ((0, 0), (0, OW - O)))                 # [D, OW]
    b_cat = jnp.concatenate([b_agender, b_mask])                  # [O]
    b_cat = jnp.pad(b_cat, (0, OW - O)).reshape(1, OW)            # [1, OW]
    return w_cat, b_cat


@functools.partial(jax.jit, static_argnames=("oa", "om", "tb"))
def mask_agender_head(x, w_cat, b_cat, *, oa=3, om=6, tb=2048):
    """Forward pass of MaskAGenderClassificationHead.

    Args:
      x:     [B, D] input features.
      w_cat: [D, OW] fused weight from fuse_head_params().
      b_cat: [1, OW] fused bias from fuse_head_params().
      oa:    output size of fc_agender (3).
      om:    output size of fc_mask (6).
      tb:    max batch-tile rows per grid step.

    Returns dict with 'gen' [B, oa-1], 'age' [B], 'mask' [B, om].
    """
    B, D = x.shape
    OW = w_cat.shape[1]

    # Batch tile: multiple of 8 sublanes, big enough to amortize per-step
    # overhead; for large B cap at ceil(B/2) so the grid has >= 2 steps and
    # the "parallel" axis can shard across both TensorCores on v7x.
    TB = _round_up(min(tb, B), 8)
    if B >= 1024:
        TB = min(TB, _round_up(pl.cdiv(B, 2), 8))

    out = pl.pallas_call(
        _fused_head_kernel,
        out_shape=jax.ShapeDtypeStruct((B, OW), jnp.float32),
        grid=(pl.cdiv(B, TB),),                      # ragged last block is OK:
        in_specs=[                                   # OOB rows never reach HBM.
            pl.BlockSpec((TB, D), lambda i: (i, 0)),   # x: streamed per tile
            pl.BlockSpec((D, OW), lambda i: (0, 0)),   # fused weight: resident
            pl.BlockSpec((1, OW), lambda i: (0, 0)),   # fused bias: resident
        ],
        out_specs=pl.BlockSpec((TB, OW), lambda i: (i, 0)),
        compiler_params=pltpu.CompilerParams(
            dimension_semantics=("parallel",),
        ),
    )(x, w_cat, b_cat)

    # Cheap slices of the narrow (B, OW) slab, all inside the same jit.
    agender = out[:, :oa]                  # [B, 3]
    return {
        "gen": agender[:, 0:-1],           # [B, 2]
        "age": agender[:, -1],             # [B]
        "mask": out[:, oa:oa + om],        # [B, 6]
    }


if __name__ == "__main__":
    input_size = 256
    output_size = 3
    batch = 4

    key = jax.random.PRNGKey(0)
    k_x, k_wa, k_ba, k_wm, k_bm = jax.random.split(key, 5)

    x = jax.random.normal(k_x, (batch, input_size), dtype=jnp.float32)

    # Deterministic params in PyTorch nn.Linear layout: W [out, in], b [out].
    bound = 1.0 / (input_size ** 0.5)
    w_agender = jax.random.uniform(
        k_wa, (output_size, input_size), jnp.float32, -bound, bound)
    b_agender = jax.random.uniform(
        k_ba, (output_size,), jnp.float32, -bound, bound)
    w_mask = jax.random.uniform(
        k_wm, (6, input_size), jnp.float32, -bound, bound)
    b_mask = jax.random.uniform(
        k_bm, (6,), jnp.float32, -bound, bound)

    # One-time param fusion (outside the hot path).
    w_cat, b_cat = fuse_head_params(w_agender, b_agender, w_mask, b_mask)
    w_cat, b_cat = jax.block_until_ready((w_cat, b_cat))

    out = mask_agender_head(x, w_cat, b_cat, oa=output_size, om=6)
    jax.block_until_ready(out)

    # Reference check in plain JAX.
    ref_agender = x @ w_agender.T + b_agender
    ref = {
        "gen": ref_agender[:, 0:-1],
        "age": ref_agender[:, -1],
        "mask": x @ w_mask.T + b_mask,
    }
    for k in ("gen", "age", "mask"):
        assert out[k].shape == ref[k].shape, (k, out[k].shape, ref[k].shape)
        assert jnp.allclose(out[k], ref[k], atol=1e-5, rtol=1e-5), k

    print("KERNEL_OK")
</pallas_src>

<mosaic_0001>
module attributes {stable_mosaic.version = 11 : i64} {
  func.func @_fused_head_kernel(%arg0: i32, %arg1: memref<8x256xf32, #tpu.memory_space<vmem>>, %arg2: memref<256x16xf32, #tpu.memory_space<vmem>>, %arg3: memref<1x16xf32, #tpu.memory_space<vmem>>, %arg4: memref<8x16xf32, #tpu.memory_space<vmem>>) attributes {dimension_semantics = [#tpu.dimension_semantics<parallel>], iteration_bounds = array<i64: 1>, scalar_prefetch = 0 : i64, scratch_operands = 0 : i64, tpu.core_type = #tpu.core_type<tc>, window_params = [{transform_indices = @transform_0, window_bounds = array<i64: 8, 256>}, {pipeline_mode = #tpu.pipeline_mode<synchronous>, transform_indices = @transform_1, window_bounds = array<i64: 256, 16>}, {pipeline_mode = #tpu.pipeline_mode<synchronous>, transform_indices = @transform_2, window_bounds = array<i64: 1, 16>}, {transform_indices = @transform_3, window_bounds = array<i64: 8, 16>}]} {
    %c0 = arith.constant 0 : index
    %c0_0 = arith.constant 0 : index
    %0 = vector.load %arg1[%c0, %c0_0] : memref<8x256xf32, #tpu.memory_space<vmem>>, vector<8x256xf32>
    %c0_1 = arith.constant 0 : index
    %c0_2 = arith.constant 0 : index
    %1 = vector.load %arg2[%c0_1, %c0_2] : memref<256x16xf32, #tpu.memory_space<vmem>>, vector<256x16xf32>
    %cst = arith.constant dense<0.000000e+00> : vector<8x16xf32>
    %2 = tpu.matmul %0, %1, %cst {dimension_numbers = #tpu.dot_dimension_numbers<[1], [0], [0], [1], [0, 0, 1, 1], [], []>} : vector<8x256xf32>, vector<256x16xf32>, vector<8x16xf32> -> vector<8x16xf32>
    %c0_3 = arith.constant 0 : index
    %c0_4 = arith.constant 0 : index
    %3 = vector.load %arg3[%c0_3, %c0_4] : memref<1x16xf32, #tpu.memory_space<vmem>>, vector<1x16xf32>
    %4 = vector.broadcast %3 : vector<1x16xf32> to vector<8x16xf32>
    %5 = arith.addf %2, %4 : vector<8x16xf32>
    %c0_5 = arith.constant 0 : index
    %c0_6 = arith.constant 0 : index
    %6 = vector.load %arg4[%c0_5, %c0_6] : memref<8x16xf32, #tpu.memory_space<vmem>>, vector<8x16xf32>
    tpu.vector_store %arg4[%c0_5, %c0_6], %5 {strides = array<i32>} : memref<8x16xf32, #tpu.memory_space<vmem>>, vector<8x16xf32>,
    return
  }
  func.func @transform_0(%arg0: i32) -> (i32, i32) {
    %c0_i32 = arith.constant 0 : i32
    %c0_i32_0 = arith.constant 0 : i32
    return %arg0, %c0_i32 : i32, i32
  }
  func.func @transform_1(%arg0: i32) -> (i32, i32) {
    %c0_i32 = arith.constant 0 : i32
    %c0_i32_0 = arith.constant 0 : i32
    %c0_i32_1 = arith.constant 0 : i32
    return %c0_i32, %c0_i32_0 : i32, i32
  }
  func.func @transform_2(%arg0: i32) -> (i32, i32) {
    %c0_i32 = arith.constant 0 : i32
    %c0_i32_0 = arith.constant 0 : i32
    %c0_i32_1 = arith.constant 0 : i32
    return %c0_i32, %c0_i32_0 : i32, i32
  }
  func.func @transform_3(%arg0: i32) -> (i32, i32) {
    %c0_i32 = arith.constant 0 : i32
    %c0_i32_0 = arith.constant 0 : i32
    return %arg0, %c0_i32 : i32, i32
  }
}

</mosaic_0001>

<llo_original>
// kernel: mask_agender_head.1
$region0: #{mask_agender_head.1}
  #allocation0 [shape = 'u32[]', space=smem, size = 0x4, offset = 0x4, fixed_abs, tag = 'smem constant byte address 0x4 - core index']
  #allocation1 [shape = 'u32[144,128]{1,0:T(1,128)}', space=vmem, size = 0x12000, scoped, tag = 'internal scratch']
  %s0 = inlined_call_operand.vmem [shape: f32[4,256], index: 0, kind: input, shape index: {}]
  %s1 = inlined_call_operand.vmem [shape: f32[256,16], index: 1, kind: input, shape index: {}]
  %s2 = inlined_call_operand.vmem [shape: f32[1,16], index: 2, kind: input, shape index: {}]
  %s3 = inlined_call_operand.vmem [shape: f32[4,16], index: 3, kind: output, shape index: {}]
  %s4 = sld [smem:[#allocation0]]
  $region52: #{mask_agender_head.1} parent=0
    _
  %s6 = ssub.s32 1, %s4
  %s7 = scalar_select 0, %s6, %s4
  $region1: #{mask_agender_head.1} parent=0
    #allocation2 [shape = 'u8[4096]{0}', space=vmem, size = 0x1000, scoped, tag = 'output window, operand 0, single buffered']
    // Predicated region
    $region2: #{mask_agender_head.1} parent=1 // pred_check
      _
    $region3: #{mask_agender_head.1} parent=1 // pred_check_branch
      %9 = sbr.rel (0) target = $region5
    $region4: #{mask_agender_head.1} parent=1 // pred_region
      _
    $region5: #{mask_agender_head.1} parent=1 // pred_fallthru
      _
    // Predicated region
    $region6: #{mask_agender_head.1} parent=1 // pred_check
      _
    $region7: #{mask_agender_head.1} parent=1 // pred_check_branch
      %11 = sbr.rel (0) target = $region9
    $region8: #{mask_agender_head.1} parent=1 // pred_region
      _
    $region9: #{mask_agender_head.1} parent=1 // pred_fallthru
      _
    // Predicated region
    $region10: #{mask_agender_head.1} parent=1 // pred_check
      _
    $region11: #{mask_agender_head.1} parent=1 // pred_check_branch
      %13 = sbr.rel (0) target = $region13
    $region12: #{mask_agender_head.1} parent=1 // pred_region
      _
    $region13: #{mask_agender_head.1} parent=1 // pred_fallthru
      _
    %v14 = vld [vmem:[%s0] sm:$0xff]
    %v15 = vld [vmem:[%s0 + $0x8] sm:$0xff]
    %v16 = vld [vmem:[%s1] sm:$0xff]
    %v17 = vld [vmem:[%s1 + $0x8] sm:$0xff]
    %v18 = vld [vmem:[%s1 + $0x10] sm:$0xff]
    %v19 = vld [vmem:[%s1 + $0x18] sm:$0xff]
    %v20 = vld [vmem:[%s1 + $0x20] sm:$0xff]
    %v21 = vld [vmem:[%s1 + $0x28] sm:$0xff]
    %v22 = vld [vmem:[%s1 + $0x30] sm:$0xff]
    %v23 = vld [vmem:[%s1 + $0x38] sm:$0xff]
    %v24 = vld [vmem:[%s1 + $0x40] sm:$0xff]
    %v25 = vld [vmem:[%s1 + $0x48] sm:$0xff]
    %v26 = vld [vmem:[%s1 + $0x50] sm:$0xff]
    %v27 = vld [vmem:[%s1 + $0x58] sm:$0xff]
    %v28 = vld [vmem:[%s1 + $0x60] sm:$0xff]
    %v29 = vld [vmem:[%s1 + $0x68] sm:$0xff]
    %v30 = vld [vmem:[%s1 + $0x70] sm:$0xff]
    %v31 = vld [vmem:[%s1 + $0x78] sm:$0xff]
    %v32 = vld [vmem:[%s1 + $0x80] sm:$0xff]
    %v33 = vld [vmem:[%s1 + $0x88] sm:$0xff]
    %v34 = vld [vmem:[%s1 + $0x90] sm:$0xff]
    %v35 = vld [vmem:[%s1 + $0x98] sm:$0xff]
    %v36 = vld [vmem:[%s1 + $0xa0] sm:$0xff]
    %v37 = vld [vmem:[%s1 + $0xa8] sm:$0xff]
    %v38 = vld [vmem:[%s1 + $0xb0] sm:$0xff]
    %v39 = vld [vmem:[%s1 + $0xb8] sm:$0xff]
    %v40 = vld [vmem:[%s1 + $0xc0] sm:$0xff]
    %v41 = vld [vmem:[%s1 + $0xc8] sm:$0xff]
    %v42 = vld [vmem:[%s1 + $0xd0] sm:$0xff]
    %v43 = vld [vmem:[%s1 + $0xd8] sm:$0xff]
    %v44 = vld [vmem:[%s1 + $0xe0] sm:$0xff]
    %v45 = vld [vmem:[%s1 + $0xe8] sm:$0xff]
    %v46 = vld [vmem:[%s1 + $0xf0] sm:$0xff]
    %v47 = vld [vmem:[%s1 + $0xf8] sm:$0xff]
    %v48 = vld [vmem:[%s2] sm:$0x1]
    %v50 = vlaneseq
    %v51 = vshrl.u32 %v50, 7
    %v52 = vsub.s32 0, %v51
    %v53 = vrot.slane %v48, %v52
    %v57 = vcombine.low %v14, %v15
    %v58 = vcombine.high %v14, %v15
    %61 = vmatprep.subr.mxu0 0.0
    %62 = vmatpush1.msra.mxu0 %v31
    %63 = vmatprep.subr.mxu0 0.0
    %64 = vmatpush1.msra.mxu0 %v30
    %65 = vmatprep.subr.mxu0 0.0
    %66 = vmatpush1.msra.mxu0 %v29
    %67 = vmatprep.subr.mxu0 0.0
    %68 = vmatpush1.msra.mxu0 %v28
    %69 = vmatprep.subr.mxu0 0.0
    %70 = vmatpush1.msra.mxu0 %v27
    %71 = vmatprep.subr.mxu0 0.0
    %72 = vmatpush1.msra.mxu0 %v26
    %73 = vmatprep.subr.mxu0 0.0
    %74 = vmatpush1.msra.mxu0 %v25
    %75 = vmatprep.subr.mxu0 0.0
    %76 = vmatpush1.msra.mxu0 %v24
    %77 = vmatprep.subr.mxu0 0.0
    %78 = vmatpush1.msra.mxu0 %v23
    %79 = vmatprep.subr.mxu0 0.0
    %80 = vmatpush1.msra.mxu0 %v22
    %81 = vmatprep.subr.mxu0 0.0
    %82 = vmatpush1.msra.mxu0 %v21
    %83 = vmatprep.subr.mxu0 0.0
    %84 = vmatpush1.msra.mxu0 %v20
    %85 = vmatprep.subr.mxu0 0.0
    %86 = vmatpush1.msra.mxu0 %v19
    %87 = vmatprep.subr.mxu0 0.0
    %88 = vmatpush1.msra.mxu0 %v18
    %89 = vmatprep.subr.mxu0 0.0
    %90 = vmatpush1.msra.mxu0 %v17
    %91 = vmatprep.subr.mxu0 0.0
    %92 = vmatpush1.msra.mxu0 %v16
    %93 = vmatprep.subr.mxu0 0.0
    %94 = vmatpush2.msra.mxu0 %v47
    %95 = vmatprep.subr.mxu0 0.0
    %96 = vmatpush2.msra.mxu0 %v46
    %97 = vmatprep.subr.mxu0 0.0
    %98 = vmatpush2.msra.mxu0 %v45
    %99 = vmatprep.subr.mxu0 0.0
    %100 = vmatpush2.msra.mxu0 %v44
    %101 = vmatprep.subr.mxu0 0.0
    %102 = vmatpush2.msra.mxu0 %v43
    %103 = vmatprep.subr.mxu0 0.0
    %104 = vmatpush2.msra.mxu0 %v42
    %105 = vmatprep.subr.mxu0 0.0
    %106 = vmatpush2.msra.mxu0 %v41
    %107 = vmatprep.subr.mxu0 0.0
    %108 = vmatpush2.msra.mxu0 %v40
    %109 = vmatprep.subr.mxu0 0.0
    %110 = vmatpush2.msra.mxu0 %v39
    %111 = vmatprep.subr.mxu0 0.0
    %112 = vmatpush2.msra.mxu0 %v38
    %113 = vmatprep.subr.mxu0 0.0
    %114 = vmatpush2.msra.mxu0 %v37
    %115 = vmatprep.subr.mxu0 0.0
    %116 = vmatpush2.msra.mxu0 %v36
    %117 = vmatprep.subr.mxu0 0.0
    %118 = vmatpush2.msra.mxu0 %v35
    %119 = vmatprep.subr.mxu0 0.0
    %120 = vmatpush2.msra.mxu0 %v34
    %121 = vmatprep.subr.mxu0 0.0
    %122 = vmatpush2.msra.mxu0 %v33
    %123 = vmatprep.subr.mxu0 0.0
    %124 = vmatpush2.msra.mxu0 %v32
    %125 = vmatprep.mubr.f32.mxu0 %v58
    %126 = vmatmul.mubr.f32.gmra.mxu0 %v57
    %v127 = vpop.f32.mrf.mxu0
    %v128 = vadd.f32 %v53, %v127
    %v129 = vpop.f32.mrf.mxu0
    %130 = vdwg.mxu0
    %vm131 = vcmask 130048
    %132 = vst.msk [vmem:[#allocation2] sm:$0xff] %vm131, %v128
    // Predicated region
    $region14: #{mask_agender_head.1} parent=1 // pred_check
      _
    $region15: #{mask_agender_head.1} parent=1 // pred_check_branch
      %134 = sbr.rel (0) target = $region17
    $region16: #{mask_agender_head.1} parent=1 // pred_region
      // Predicated region
      $region18: #{mask_agender_head.1} parent=16 // pred_check
        _
      $region19: #{mask_agender_head.1} parent=16 // pred_check_branch
        %136 = sbr.rel (0) target = $region21
      $region20: #{mask_agender_head.1} parent=16 // pred_region
        // Predicated region
        $region22: #{mask_agender_head.1} parent=20 // pred_check
          _
        $region23: #{mask_agender_head.1} parent=20 // pred_check_branch
          %138 = sbr.rel target = $region25
        $region24: #{mask_agender_head.1} parent=20 // pred_region
          // Predicated region
          $region37: #{mask_agender_head.1} parent=24 // pred_check
            _
          $region38: #{mask_agender_head.1} parent=24 // pred_check_branch
            %154 = sbr.rel (0) target = $region40
          $region39: #{mask_agender_head.1} parent=24 // pred_region
            %s156 = ssub.s32 16, 1
            loop: start=0, step=1, limit=1
            $region41: #{mask_agender_head.1} parent=39 // loop_pre_header
              _
            $region42: #{mask_agender_head.1} parent=39 // loop_header
              %s158 = sphi 0, %s162
              %p159 = scmp.ge.s32.totalorder %s158, 1
              %s163 = sphi [#allocation2], [#allocation2]
              %s164 = sphi %s3, %s3
            $region43: #{mask_agender_head.1} parent=39 // loop_header_branch
              %161 = sbr.rel (%p159) target = $region47
            $region44: #{mask_agender_head.1} parent=39 // loop_body
              %v165 = vld [vmem:[%s163] sm:%s156]
              %166 = vst [vmem:[%s164] sm:%s156] %v165
            $region45: #{mask_agender_head.1} parent=39 // loop_footer
              %s162 = sadd.s32 1, %s158
            $region46: #{mask_agender_head.1} parent=39 // loop_footer_branch
              %157 = sbr.rel target = $region42
            $region47: #{mask_agender_head.1} parent=39 // loop_exit
              _
          $region40: #{mask_agender_head.1} parent=24 // pred_fallthru
            _
        $region25: #{mask_agender_head.1} parent=20 // pred_fallthru
          _
        // Predicated region
        $region26: #{mask_agender_head.1} parent=20 // pred_check
          _
        $region27: #{mask_agender_head.1} parent=20 // pred_check_branch
          %140 = sbr.rel (0) target = $region29
        $region28: #{mask_agender_head.1} parent=20 // pred_region
          %s142 = ssub.s32 16, 1
          loop: start=0, step=1, limit=1
          $region30: #{mask_agender_head.1} parent=28 // loop_pre_header
            _
          $region31: #{mask_agender_head.1} parent=28 // loop_header
            %s144 = sphi 0, %s148
            %p145 = scmp.ge.s32.totalorder %s144, 1
            %s149 = sphi [#allocation2], [#allocation2]
            %s150 = sphi %s3, %s3
          $region32: #{mask_agender_head.1} parent=28 // loop_header_branch
            %147 = sbr.rel (%p145) target = $region36
          $region33: #{mask_agender_head.1} parent=28 // loop_body
            %v151 = vld [vmem:[%s149] sm:%s142]
            %152 = vst [vmem:[%s150] sm:%s142] %v151
          $region34: #{mask_agender_head.1} parent=28 // loop_footer
            %s148 = sadd.s32 1, %s144
          $region35: #{mask_agender_head.1} parent=28 // loop_footer_branch
            %143 = sbr.rel target = $region31
          $region36: #{mask_agender_head.1} parent=28 // loop_exit
            _
        $region29: #{mask_agender_head.1} parent=20 // pred_fallthru
          _
      $region21: #{mask_agender_head.1} parent=16 // pred_fallthru
        _
      %167 = vnop
    $region17: #{mask_agender_head.1} parent=1 // pred_fallthru
      _
    // Predicated region
    $region48: #{mask_agender_head.1} parent=1 // pred_check
      _
    $region49: #{mask_agender_head.1} parent=1 // pred_check_branch
      %169 = sbr.rel (0) target = $region51
    $region50: #{mask_agender_head.1} parent=1 // pred_region
      _
    $region51: #{mask_agender_head.1} parent=1 // pred_fallthru
      _

</llo_original>
